<compile_context>
chip_gen: v7x
topology: tpu7x:2x2x1
jax: 0.10.0
libtpu: 0.0.40
codegen_flags: <defaults>
</compile_context>

<pallas_src>
import jax
import jax.numpy as jnp
from jax.experimental import pallas as pl
from jax.experimental.pallas import tpu as pltpu


def edge_block_kernel(edges_ref, recv_ref, send_ref, nodes_ref, w_ref, b_ref,
                      out_ref, collected_ref):
    edges = edges_ref[...]            # [TILE_E, edgedim]   bf16
    nodes = nodes_ref[...]            # [N, nodedim]        bf16 (resident)
    recv = recv_ref[...]              # [1, TILE_E]         int32 (lane-packed)
    send = send_ref[...]              # [1, TILE_E]         int32

    n_nodes, nodedim = nodes.shape
    tile_e, edgedim = edges.shape

    # --- gather nodes[recv], nodes[send] via a bf16 one-hot matmul (MXU) ----
    # One-hot is [N, TILE_E]: the lane-packed index row broadcasts across the
    # sublane axis with no cross-lane transpose.  Contract over N (dim 0 of
    # both operands) -> [TILE_E, nodedim], f32 accumulation.
    node_ids = jax.lax.broadcasted_iota(jnp.int32, (n_nodes, tile_e), 0)
    recv_oh = (node_ids == recv).astype(jnp.float32).astype(jnp.bfloat16)
    send_oh = (node_ids == send).astype(jnp.float32).astype(jnp.bfloat16)
    contract_n = (((0,), (0,)), ((), ()))
    recv_nodes = jax.lax.dot_general(recv_oh, nodes, contract_n,
                                     preferred_element_type=jnp.float32)
    send_nodes = jax.lax.dot_general(send_oh, nodes, contract_n,
                                     preferred_element_type=jnp.float32)

    # --- assemble collected = [edges | nodes[recv] | nodes[send]] in VMEM ---
    collected_ref[:, :edgedim] = edges
    collected_ref[:, edgedim:edgedim + nodedim] = recv_nodes.astype(jnp.bfloat16)
    collected_ref[:, edgedim + nodedim:] = send_nodes.astype(jnp.bfloat16)

    # --- one fused MXU dot against the full (output-padded) weight ----------
    acc = jnp.dot(collected_ref[...], w_ref[...],
                  preferred_element_type=jnp.float32)
    out_ref[...] = acc + b_ref[...]   # bias broadcast over edge rows


def edge_block(edges, nodes, receivers, senders, weight, bias, *, tile_e=128):
    """edges:[E,edgedim] nodes:[N,nodedim] receivers/senders:[E] int
       weight:[edgedim+2*nodedim, edgedim] (input-major, i.e. torch W.T)
       bias:[edgedim]"""
    e, edgedim = edges.shape
    n, nodedim = nodes.shape
    k_in = edgedim + 2 * nodedim
    assert weight.shape == (k_in, edgedim)

    # Lane-dense output: zero-pad the Linear's output axis up to 128 lanes.
    out_p = pl.cdiv(edgedim, 128) * 128
    w_pad = jnp.zeros((k_in, out_p), jnp.float32).at[:, :edgedim].set(
        weight.astype(jnp.float32))
    b_pad = jnp.zeros((1, out_p), jnp.float32).at[:, :edgedim].set(
        bias.astype(jnp.float32))

    # Pad E to a tile multiple; padded rows use index 0 and are sliced off.
    e_pad = pl.cdiv(e, tile_e) * tile_e
    if e_pad != e:
        edges = jnp.pad(edges, ((0, e_pad - e), (0, 0)))
        receivers = jnp.pad(receivers, (0, e_pad - e))
        senders = jnp.pad(senders, (0, e_pad - e))

    edges_bf = edges.astype(jnp.bfloat16)
    nodes_bf = nodes.astype(jnp.bfloat16)
    w_bf = w_pad.astype(jnp.bfloat16)
    recv_row = receivers.astype(jnp.int32).reshape(1, e_pad)
    send_row = senders.astype(jnp.int32).reshape(1, e_pad)

    grid = (e_pad // tile_e,)

    flops = (2 * 2 * e_pad * n * nodedim       # two one-hot gathers
             + 2 * e_pad * k_in * out_p)       # fused linear
    bytes_accessed = (edges_bf.size * 2 + nodes_bf.size * 2 + w_bf.size * 2
                      + 2 * e_pad * 4 + b_pad.size * 4 + e_pad * out_p * 4)

    out = pl.pallas_call(
        edge_block_kernel,
        out_shape=jax.ShapeDtypeStruct((e_pad, out_p), jnp.float32),
        grid=grid,
        in_specs=[
            pl.BlockSpec((tile_e, edgedim), lambda i: (i, 0)),   # edges tile
            pl.BlockSpec((1, tile_e), lambda i: (0, i)),         # receivers
            pl.BlockSpec((1, tile_e), lambda i: (0, i)),         # senders
            pl.BlockSpec((n, nodedim), lambda i: (0, 0)),        # nodes (resident)
            pl.BlockSpec((k_in, out_p), lambda i: (0, 0)),       # weight (resident)
            pl.BlockSpec((1, out_p), lambda i: (0, 0)),          # bias (resident)
        ],
        out_specs=pl.BlockSpec((tile_e, out_p), lambda i: (i, 0)),
        scratch_shapes=[pltpu.VMEM((tile_e, k_in), jnp.bfloat16)],
        compiler_params=pltpu.CompilerParams(
            dimension_semantics=("parallel",),
            vmem_limit_bytes=32 * 1024 * 1024),
        cost_estimate=pl.CostEstimate(
            flops=flops, transcendentals=0, bytes_accessed=bytes_accessed),
    )(edges_bf, recv_row, send_row, nodes_bf, w_bf, b_pad)

    return out[:e, :edgedim]


if __name__ == "__main__":
    key = jax.random.PRNGKey(0)
    k1, k2, k3, k4, k5, k6 = jax.random.split(key, 6)

    N_nodes, nodedim = 64, 8      # graph.nodes : [64, 8]
    N_edges, edgedim = 200, 8     # graph.edges : [200, 8] (exercises E padding)
    in_features = edgedim + 2 * nodedim

    nodes = jax.random.normal(k1, (N_nodes, nodedim), dtype=jnp.float32)
    edges = jax.random.normal(k2, (N_edges, edgedim), dtype=jnp.float32)
    receivers = jax.random.randint(k3, (N_edges,), 0, N_nodes, dtype=jnp.int32)
    senders = jax.random.randint(k4, (N_edges,), 0, N_nodes, dtype=jnp.int32)

    # Deterministic nn.Linear-style init (uniform in +/- 1/sqrt(in_features)).
    bound = 1.0 / (in_features ** 0.5)
    weight = jax.random.uniform(k5, (in_features, edgedim),
                                minval=-bound, maxval=bound, dtype=jnp.float32)
    bias = jax.random.uniform(k6, (edgedim,), minval=-bound, maxval=bound,
                              dtype=jnp.float32)

    updated_edges = edge_block(edges, nodes, receivers, senders, weight, bias)
    jax.block_until_ready(updated_edges)
    assert updated_edges.shape == (N_edges, edgedim)

    # f32 reference (module semantics); loose tolerance covers bf16 MXU operands.
    collected = jnp.concatenate([edges, nodes[receivers], nodes[senders]], -1)
    ref_f32 = jnp.dot(collected, weight,
                      precision=jax.lax.Precision.HIGHEST) + bias
    assert jnp.allclose(updated_edges, ref_f32, atol=5e-2, rtol=5e-2)

    # bf16-operand reference: matches kernel numerics up to f32 accumulation order.
    eb = edges.astype(jnp.bfloat16).astype(jnp.float32)
    nb = nodes.astype(jnp.bfloat16).astype(jnp.float32)
    wb = weight.astype(jnp.bfloat16).astype(jnp.float32)
    collected_b = jnp.concatenate([eb, nb[receivers], nb[senders]], -1)
    ref_bf16 = jnp.dot(collected_b, wb,
                       precision=jax.lax.Precision.HIGHEST) + bias
    assert jnp.allclose(updated_edges, ref_bf16, atol=1e-3, rtol=1e-3)

    print("KERNEL_OK")
</pallas_src>

<mosaic_0001>
module attributes {stable_mosaic.version = 11 : i64} {
  func.func @edge_block_kernel(%arg0: i32, %arg1: memref<128x8xbf16, #tpu.memory_space<vmem>>, %arg2: memref<1x128xi32, #tpu.memory_space<vmem>>, %arg3: memref<1x128xi32, #tpu.memory_space<vmem>>, %arg4: memref<64x8xbf16, #tpu.memory_space<vmem>>, %arg5: memref<24x128xbf16, #tpu.memory_space<vmem>>, %arg6: memref<1x128xf32, #tpu.memory_space<vmem>>, %arg7: memref<128x128xf32, #tpu.memory_space<vmem>>, %arg8: memref<128x24xbf16, #tpu.memory_space<vmem>>) attributes {dimension_semantics = [#tpu.dimension_semantics<parallel>], iteration_bounds = array<i64: 2>, scalar_prefetch = 0 : i64, scratch_operands = 1 : i64, tpu.core_type = #tpu.core_type<tc>, window_params = [{transform_indices = @transform_0, window_bounds = array<i64: 128, 8>}, {transform_indices = @transform_1, window_bounds = array<i64: 1, 128>}, {transform_indices = @transform_2, window_bounds = array<i64: 1, 128>}, {pipeline_mode = #tpu.pipeline_mode<synchronous>, transform_indices = @transform_3, window_bounds = array<i64: 64, 8>}, {pipeline_mode = #tpu.pipeline_mode<synchronous>, transform_indices = @transform_4, window_bounds = array<i64: 24, 128>}, {pipeline_mode = #tpu.pipeline_mode<synchronous>, transform_indices = @transform_5, window_bounds = array<i64: 1, 128>}, {transform_indices = @transform_6, window_bounds = array<i64: 128, 128>}]} {
    %c0 = arith.constant 0 : index
    %c0_0 = arith.constant 0 : index
    %0 = vector.load %arg1[%c0, %c0_0] : memref<128x8xbf16, #tpu.memory_space<vmem>>, vector<128x8xbf16>
    %c0_1 = arith.constant 0 : index
    %c0_2 = arith.constant 0 : index
    %1 = vector.load %arg4[%c0_1, %c0_2] : memref<64x8xbf16, #tpu.memory_space<vmem>>, vector<64x8xbf16>
    %c0_3 = arith.constant 0 : index
    %c0_4 = arith.constant 0 : index
    %2 = vector.load %arg2[%c0_3, %c0_4] : memref<1x128xi32, #tpu.memory_space<vmem>>, vector<1x128xi32>
    %c0_5 = arith.constant 0 : index
    %c0_6 = arith.constant 0 : index
    %3 = vector.load %arg3[%c0_5, %c0_6] : memref<1x128xi32, #tpu.memory_space<vmem>>, vector<1x128xi32>
    %4 = tpu.iota {dimensions = array<i32: 0>} : vector<64x128xi32>
    %5 = vector.broadcast %2 : vector<1x128xi32> to vector<64x128xi32>
    %6 = arith.cmpi eq, %4, %5 : vector<64x128xi32>
    %7 = arith.extui %6 : vector<64x128xi1> to vector<64x128xi32>
    %8 = arith.sitofp %7 : vector<64x128xi32> to vector<64x128xf32>
    %9 = arith.truncf %8 : vector<64x128xf32> to vector<64x128xbf16>
    %10 = vector.broadcast %3 : vector<1x128xi32> to vector<64x128xi32>
    %11 = arith.cmpi eq, %4, %10 : vector<64x128xi32>
    %12 = arith.extui %11 : vector<64x128xi1> to vector<64x128xi32>
    %13 = arith.sitofp %12 : vector<64x128xi32> to vector<64x128xf32>
    %14 = arith.truncf %13 : vector<64x128xf32> to vector<64x128xbf16>
    %cst = arith.constant dense<0.000000e+00> : vector<128x8xf32>
    %15 = tpu.matmul %9, %1, %cst {dimension_numbers = #tpu.dot_dimension_numbers<[0], [0], [1], [1], [0, 1, 1, 1], [], []>} : vector<64x128xbf16>, vector<64x8xbf16>, vector<128x8xf32> -> vector<128x8xf32>
    %cst_7 = arith.constant dense<0.000000e+00> : vector<128x8xf32>
    %16 = tpu.matmul %14, %1, %cst_7 {dimension_numbers = #tpu.dot_dimension_numbers<[0], [0], [1], [1], [0, 1, 1, 1], [], []>} : vector<64x128xbf16>, vector<64x8xbf16>, vector<128x8xf32> -> vector<128x8xf32>
    %c0_8 = arith.constant 0 : index
    %c0_9 = arith.constant 0 : index
    %17 = vector.load %arg8[%c0_8, %c0_9] : memref<128x24xbf16, #tpu.memory_space<vmem>>, vector<128x8xbf16>
    tpu.vector_store %arg8[%c0_8, %c0_9], %0 {strides = array<i32>} : memref<128x24xbf16, #tpu.memory_space<vmem>>, vector<128x8xbf16>,
    %18 = arith.truncf %15 : vector<128x8xf32> to vector<128x8xbf16>
    %c0_10 = arith.constant 0 : index
    %c8 = arith.constant 8 : index
    %19 = vector.load %arg8[%c0_10, %c8] : memref<128x24xbf16, #tpu.memory_space<vmem>>, vector<128x8xbf16>
    tpu.vector_store %arg8[%c0_10, %c8], %18 {strides = array<i32>} : memref<128x24xbf16, #tpu.memory_space<vmem>>, vector<128x8xbf16>,
    %20 = arith.truncf %16 : vector<128x8xf32> to vector<128x8xbf16>
    %c0_11 = arith.constant 0 : index
    %c16 = arith.constant 16 : index
    %21 = vector.load %arg8[%c0_11, %c16] : memref<128x24xbf16, #tpu.memory_space<vmem>>, vector<128x8xbf16>
    tpu.vector_store %arg8[%c0_11, %c16], %20 {strides = array<i32>} : memref<128x24xbf16, #tpu.memory_space<vmem>>, vector<128x8xbf16>,
    %c0_12 = arith.constant 0 : index
    %c0_13 = arith.constant 0 : index
    %22 = vector.load %arg8[%c0_12, %c0_13] : memref<128x24xbf16, #tpu.memory_space<vmem>>, vector<128x24xbf16>
    %c0_14 = arith.constant 0 : index
    %c0_15 = arith.constant 0 : index
    %23 = vector.load %arg5[%c0_14, %c0_15] : memref<24x128xbf16, #tpu.memory_space<vmem>>, vector<24x128xbf16>
    %cst_16 = arith.constant dense<0.000000e+00> : vector<128x128xf32>
    %24 = tpu.matmul %22, %23, %cst_16 {dimension_numbers = #tpu.dot_dimension_numbers<[1], [0], [0], [1], [0, 0, 1, 1], [], []>} : vector<128x24xbf16>, vector<24x128xbf16>, vector<128x128xf32> -> vector<128x128xf32>
    %c0_17 = arith.constant 0 : index
    %c0_18 = arith.constant 0 : index
    %25 = vector.load %arg6[%c0_17, %c0_18] : memref<1x128xf32, #tpu.memory_space<vmem>>, vector<1x128xf32>
    %26 = vector.broadcast %25 : vector<1x128xf32> to vector<128x128xf32>
    %27 = arith.addf %24, %26 : vector<128x128xf32>
    %c0_19 = arith.constant 0 : index
    %c0_20 = arith.constant 0 : index
    %28 = vector.load %arg7[%c0_19, %c0_20] : memref<128x128xf32, #tpu.memory_space<vmem>>, vector<128x128xf32>
    tpu.vector_store %arg7[%c0_19, %c0_20], %27 {strides = array<i32>} : memref<128x128xf32, #tpu.memory_space<vmem>>, vector<128x128xf32>,
    return
  }
  func.func @transform_0(%arg0: i32) -> (i32, i32) {
    %c0_i32 = arith.constant 0 : i32
    %c0_i32_0 = arith.constant 0 : i32
    return %arg0, %c0_i32 : i32, i32
  }
  func.func @transform_1(%arg0: i32) -> (i32, i32) {
    %c0_i32 = arith.constant 0 : i32
    %c0_i32_0 = arith.constant 0 : i32
    return %c0_i32, %arg0 : i32, i32
  }
  func.func @transform_2(%arg0: i32) -> (i32, i32) {
    %c0_i32 = arith.constant 0 : i32
    %c0_i32_0 = arith.constant 0 : i32
    return %c0_i32, %arg0 : i32, i32
  }
  func.func @transform_3(%arg0: i32) -> (i32, i32) {
    %c0_i32 = arith.constant 0 : i32
    %c0_i32_0 = arith.constant 0 : i32
    %c0_i32_1 = arith.constant 0 : i32
    return %c0_i32, %c0_i32_0 : i32, i32
  }
  func.func @transform_4(%arg0: i32) -> (i32, i32) {
    %c0_i32 = arith.constant 0 : i32
    %c0_i32_0 = arith.constant 0 : i32
    %c0_i32_1 = arith.constant 0 : i32
    return %c0_i32, %c0_i32_0 : i32, i32
  }
  func.func @transform_5(%arg0: i32) -> (i32, i32) {
    %c0_i32 = arith.constant 0 : i32
    %c0_i32_0 = arith.constant 0 : i32
    %c0_i32_1 = arith.constant 0 : i32
    return %c0_i32, %c0_i32_0 : i32, i32
  }
  func.func @transform_6(%arg0: i32) -> (i32, i32) {
    %c0_i32 = arith.constant 0 : i32
    %c0_i32_0 = arith.constant 0 : i32
    return %arg0, %c0_i32 : i32, i32
  }
}

</mosaic_0001>

<llo_original>
// kernel: tpu_custom_call.1
$region0: #{tpu_custom_call.1}
  #allocation0 [shape = 'u32[]', space=smem, size = 0x4, offset = 0x4, fixed_abs, tag = 'smem constant byte address 0x4 - core index']
  #allocation1 [shape = 'u32[144,128]{1,0:T(1,128)}', space=vmem, size = 0x12000, scoped, tag = 'internal scratch']
  #allocation2 [shape = 'bf16[128,24]{1,0:T(16,128)(2,1)}', space=vmem, size = 0x8000, scoped, tag = 'scratch operand']
  %s0 = inlined_call_operand.vmem [shape: bf16[256,8], index: 0, kind: input, shape index: {}]
  %s1 = inlined_call_operand.vmem [shape: s32[1,256], index: 1, kind: input, shape index: {}]
  %s2 = inlined_call_operand.vmem [shape: s32[1,256], index: 2, kind: input, shape index: {}]
  %s3 = inlined_call_operand.vmem [shape: bf16[64,8], index: 3, kind: input, shape index: {}]
  %s4 = inlined_call_operand.vmem [shape: bf16[24,128], index: 4, kind: input, shape index: {}]
  %s5 = inlined_call_operand.vmem [shape: f32[1,128], index: 5, kind: input, shape index: {}]
  %s6 = inlined_call_operand.hbm [shape: f32[256,128], index: 6, kind: output, shape index: {}]
  %s7 = sld [smem:[#allocation0]]
  $region57: #{tpu_custom_call.1} parent=0
    _
  %s9 = ssub.s32 1, %s7
  %s10 = scalar_select 0, %s9, %s7
  $region1: #{tpu_custom_call.1} parent=0
    #allocation3 [shape = 'u8[131072]{0}', space=vmem, size = 0x20000, scoped, tag = 'output window, operand 0']
    #allocation4 [shape = 's32[2]{0}', space=sflag, size = 0x8, scoped, tag = 'scoped memory for tpu_custom_call.1']
    %11 = vsyncpa [#allocation4], 0
    %s12 = scalar_lea.sflag [#allocation4], 1
    %13 = vsyncpa %s12, 0
    loop: start=0, step=1, limit=4
    $region2: #{tpu_custom_call.1} parent=1 // loop_pre_header
      _
    $region3: #{tpu_custom_call.1} parent=1 // loop_header
      %s15 = sphi 0, %s19
      %p16 = scmp.ge.s32.totalorder %s15, 4
      %s25 = sphi 0, %s27
      %s28 = sphi 0, %s25
      %s29 = sphi 0, %s28
      %s45 = sphi 0, %s29
      %s51 = sphi 0, %s53
      %s54 = sphi 0, %s51
      %s55 = sphi 0, %s54
      %s71 = sphi 0, %s55
      %s77 = sphi 0, %s79
      %s80 = sphi 0, %s77
      %s81 = sphi 0, %s80
      %s97 = sphi 0, %s81
      %s101 = sphi 0, %s101
      %s103 = sphi 0, %s101
      %s104 = sphi 0, %s103
      %s118 = sphi 0, %s104
      %s122 = sphi 0, %s122
      %s124 = sphi 0, %s122
      %s125 = sphi 0, %s124
      %s139 = sphi 0, %s125
      %s143 = sphi 0, %s143
      %s145 = sphi 0, %s143
      %s146 = sphi 0, %s145
      %s160 = sphi 0, %s146
      %s166 = sphi 0, %s168
      %s169 = sphi 0, %s166
      %s170 = sphi 0, %s169
      %s186 = sphi 0, %s170
    $region4: #{tpu_custom_call.1} parent=1 // loop_header_branch
      %18 = sbr.rel (%p16) target = $region8
    $region5: #{tpu_custom_call.1} parent=1 // loop_body
      %s20 = ssub.s32 %s15, 1
      %s21 = ssub.s32 %s15, 2
      %s22 = sadd.s32 %s15, 1
      %s23 = ssub.s32 %s15, %s22
      %p24 = scmp.eq.s32.totalorder %s23, 0
      %s26 = sadd.s32 %s25, 1
      %s27 = scalar_select %p24, %s25, %s26
      %p30 = pneg %p24
      %p31 = scmp.eq.s32.totalorder %s15, 1
      %p32 = por %p30, %p31
      %p33 = scmp.ne.s32.totalorder %s25, %s28
      %p34 = scmp.eq.s32.totalorder %s15, 0
      %p35 = por %p33, %p34
      %p36 = scmp.ne.s32.totalorder %s25, %s28
      %p37 = scmp.eq.s32.totalorder %s20, 1
      %p38 = por %p36, %p37
      %p39 = scmp.ne.s32.totalorder %s28, %s29
      %p40 = scmp.eq.s32.totalorder %s20, 0
      %p41 = por %p39, %p40
      %p42 = scmp.ne.s32.totalorder %s28, %s29
      %p43 = scmp.eq.s32.totalorder %s21, 1
      %p44 = por %p42, %p43
      %p46 = scmp.ne.s32.totalorder %s29, %s45
      %p47 = scmp.eq.s32.totalorder %s21, 0
      %p48 = por %p46, %p47
      %s49 = ssub.s32 %s15, %s22
      %p50 = scmp.eq.s32.totalorder %s49, 0
      %s52 = sadd.s32 %s51, 1
      %s53 = scalar_select %p50, %s51, %s52
      %p56 = pneg %p50
      %p57 = scmp.eq.s32.totalorder %s15, 1
      %p58 = por %p56, %p57
      %p59 = scmp.ne.s32.totalorder %s51, %s54
      %p60 = scmp.eq.s32.totalorder %s15, 0
      %p61 = por %p59, %p60
      %p62 = scmp.ne.s32.totalorder %s51, %s54
      %p63 = scmp.eq.s32.totalorder %s20, 1
      %p64 = por %p62, %p63
      %p65 = scmp.ne.s32.totalorder %s54, %s55
      %p66 = scmp.eq.s32.totalorder %s20, 0
      %p67 = por %p65, %p66
      %p68 = scmp.ne.s32.totalorder %s54, %s55
      %p69 = scmp.eq.s32.totalorder %s21, 1
      %p70 = por %p68, %p69
      %p72 = scmp.ne.s32.totalorder %s55, %s71
      %p73 = scmp.eq.s32.totalorder %s21, 0
      %p74 = por %p72, %p73
      %s75 = ssub.s32 %s15, %s22
      %p76 = scmp.eq.s32.totalorder %s75, 0
      %s78 = sadd.s32 %s77, 1
      %s79 = scalar_select %p76, %s77, %s78
      %p82 = pneg %p76
      %p83 = scmp.eq.s32.totalorder %s15, 1
      %p84 = por %p82, %p83
      %p85 = scmp.ne.s32.totalorder %s77, %s80
      %p86 = scmp.eq.s32.totalorder %s15, 0
      %p87 = por %p85, %p86
      %p88 = scmp.ne.s32.totalorder %s77, %s80
      %p89 = scmp.eq.s32.totalorder %s20, 1
      %p90 = por %p88, %p89
      %p91 = scmp.ne.s32.totalorder %s80, %s81
      %p92 = scmp.eq.s32.totalorder %s20, 0
      %p93 = por %p91, %p92
      %p94 = scmp.ne.s32.totalorder %s80, %s81
      %p95 = scmp.eq.s32.totalorder %s21, 1
      %p96 = por %p94, %p95
      %p98 = scmp.ne.s32.totalorder %s81, %s97
      %p99 = scmp.eq.s32.totalorder %s21, 0
      %p100 = por %p98, %p99
      %s102 = sadd.s32 %s101, 1
      %p105 = scmp.eq.s32.totalorder %s15, 1
      %p106 = scmp.ne.s32.totalorder %s101, %s103
      %p107 = scmp.eq.s32.totalorder %s15, 0
      %p108 = por %p106, %p107
      %p109 = scmp.ne.s32.totalorder %s101, %s103
      %p110 = scmp.eq.s32.totalorder %s20, 1
      %p111 = por %p109, %p110
      %p112 = scmp.ne.s32.totalorder %s103, %s104
      %p113 = scmp.eq.s32.totalorder %s20, 0
      %p114 = por %p112, %p113
      %p115 = scmp.ne.s32.totalorder %s103, %s104
      %p116 = scmp.eq.s32.totalorder %s21, 1
      %p117 = por %p115, %p116
      %p119 = scmp.ne.s32.totalorder %s104, %s118
      %p120 = scmp.eq.s32.totalorder %s21, 0
      %p121 = por %p119, %p120
      %s123 = sadd.s32 %s122, 1
      %p126 = scmp.eq.s32.totalorder %s15, 1
      %p127 = scmp.ne.s32.totalorder %s122, %s124
      %p128 = scmp.eq.s32.totalorder %s15, 0
      %p129 = por %p127, %p128
      %p130 = scmp.ne.s32.totalorder %s122, %s124
      %p131 = scmp.eq.s32.totalorder %s20, 1
      %p132 = por %p130, %p131
      %p133 = scmp.ne.s32.totalorder %s124, %s125
      %p134 = scmp.eq.s32.totalorder %s20, 0
      %p135 = por %p133, %p134
      %p136 = scmp.ne.s32.totalorder %s124, %s125
      %p137 = scmp.eq.s32.totalorder %s21, 1
      %p138 = por %p136, %p137
      %p140 = scmp.ne.s32.totalorder %s125, %s139
      %p141 = scmp.eq.s32.totalorder %s21, 0
      %p142 = por %p140, %p141
      %s144 = sadd.s32 %s143, 1
      %p147 = scmp.eq.s32.totalorder %s15, 1
      %p148 = scmp.ne.s32.totalorder %s143, %s145
      %p149 = scmp.eq.s32.totalorder %s15, 0
      %p150 = por %p148, %p149
      %p151 = scmp.ne.s32.totalorder %s143, %s145
      %p152 = scmp.eq.s32.totalorder %s20, 1
      %p153 = por %p151, %p152
      %p154 = scmp.ne.s32.totalorder %s145, %s146
      %p155 = scmp.eq.s32.totalorder %s20, 0
      %p156 = por %p154, %p155
      %p157 = scmp.ne.s32.totalorder %s145, %s146
      %p158 = scmp.eq.s32.totalorder %s21, 1
      %p159 = por %p157, %p158
      %p161 = scmp.ne.s32.totalorder %s146, %s160
      %p162 = scmp.eq.s32.totalorder %s21, 0
      %p163 = por %p161, %p162
      %s164 = ssub.s32 %s15, %s22
      %p165 = scmp.eq.s32.totalorder %s164, 0
      %s167 = sadd.s32 %s166, 1
      %s168 = scalar_select %p165, %s166, %s167
      %p171 = pneg %p165
      %p172 = scmp.eq.s32.totalorder %s15, 1
      %p173 = por %p171, %p172
      %p174 = scmp.ne.s32.totalorder %s166, %s169
      %p175 = scmp.eq.s32.totalorder %s15, 0
      %p176 = por %p174, %p175
      %p177 = scmp.ne.s32.totalorder %s166, %s169
      %p178 = scmp.eq.s32.totalorder %s20, 1
      %p179 = por %p177, %p178
      %p180 = scmp.ne.s32.totalorder %s169, %s170
      %p181 = scmp.eq.s32.totalorder %s20, 0
      %p182 = por %p180, %p181
      %p183 = scmp.ne.s32.totalorder %s169, %s170
      %p184 = scmp.eq.s32.totalorder %s21, 1
      %p185 = por %p183, %p184
      %p187 = scmp.ne.s32.totalorder %s170, %s186
      %p188 = scmp.eq.s32.totalorder %s21, 0
      %p189 = por %p187, %p188
      %p190 = scmp.le.s32.totalorder 1, %s15
      %p191 = scmp.lt.s32.totalorder %s15, 3
      %p192 = pnand %p190, %p191
      %p193 = pneg %p192
      // Predicated region
      $region9: #{tpu_custom_call.1} parent=5 // pred_check
        _
      $region10: #{tpu_custom_call.1} parent=5 // pred_check_branch
        %195 = sbr.rel (%p192) target = $region12
      $region11: #{tpu_custom_call.1} parent=5 // pred_region
        %s196 = ssub.s32 %s15, 1
        // Predicated region
        $region13: #{tpu_custom_call.1} parent=11 // pred_check
          %p197 = pneg %p114
        $region14: #{tpu_custom_call.1} parent=11 // pred_check_branch
          %199 = sbr.rel (%p197) target = $region16
        $region15: #{tpu_custom_call.1} parent=11 // pred_region
          _
        $region16: #{tpu_custom_call.1} parent=11 // pred_fallthru
          _
        // Predicated region
        $region17: #{tpu_custom_call.1} parent=11 // pred_check
          %p200 = pneg %p135
        $region18: #{tpu_custom_call.1} parent=11 // pred_check_branch
          %202 = sbr.rel (%p200) target = $region20
        $region19: #{tpu_custom_call.1} parent=11 // pred_region
          _
        $region20: #{tpu_custom_call.1} parent=11 // pred_fallthru
          _
        // Predicated region
        $region21: #{tpu_custom_call.1} parent=11 // pred_check
          %p203 = pneg %p156
        $region22: #{tpu_custom_call.1} parent=11 // pred_check_branch
          %205 = sbr.rel (%p203) target = $region24
        $region23: #{tpu_custom_call.1} parent=11 // pred_region
          _
        $region24: #{tpu_custom_call.1} parent=11 // pred_fallthru
          _
      $region12: #{tpu_custom_call.1} parent=5 // pred_fallthru
        _
      %p206 = scmp.lt.s32.totalorder %s15, 2
      // Predicated region
      $region25: #{tpu_custom_call.1} parent=5 // pred_check
        %p207 = pneg %p206
      $region26: #{tpu_custom_call.1} parent=5 // pred_check_branch
        %209 = sbr.rel (%p207) target = $region28
      $region27: #{tpu_custom_call.1} parent=5 // pred_region
        // Predicated region
        $region29: #{tpu_custom_call.1} parent=27 // pred_check
          %p210 = pneg %p35
        $region30: #{tpu_custom_call.1} parent=27 // pred_check_branch
          %212 = sbr.rel (%p210) target = $region32
        $region31: #{tpu_custom_call.1} parent=27 // pred_region
          %s213 = smul.u32 16, %s15
          %p214 = scmp.lt.s32.totalorder %s213, 31
          %s215 = scalar_select %p214, %s213, 31
          %s216 = smul.addr %s215, 4
          %s217 = scalar_lea.vmem %s0, %s216
          %s218 = smul.u32 16, %s15
        $region32: #{tpu_custom_call.1} parent=27 // pred_fallthru
          _
        // Predicated region
        $region33: #{tpu_custom_call.1} parent=27 // pred_check
          %p219 = pneg %p61
        $region34: #{tpu_custom_call.1} parent=27 // pred_check_branch
          %221 = sbr.rel (%p219) target = $region36
        $region35: #{tpu_custom_call.1} parent=27 // pred_region
          %p222 = scmp.lt.s32.totalorder %s15, 1
          %s223 = scalar_select %p222, %s15, 1
          %s224 = scalar_lea.vmem %s1, %s223
        $region36: #{tpu_custom_call.1} parent=27 // pred_fallthru
          _
        // Predicated region
        $region37: #{tpu_custom_call.1} parent=27 // pred_check
          %p225 = pneg %p87
        $region38: #{tpu_custom_call.1} parent=27 // pred_check_branch
          %227 = sbr.rel (%p225) target = $region40
        $region39: #{tpu_custom_call.1} parent=27 // pred_region
          %p228 = scmp.lt.s32.totalorder %s15, 1
          %s229 = scalar_select %p228, %s15, 1
          %s230 = scalar_lea.vmem %s2, %s229
        $region40: #{tpu_custom_call.1} parent=27 // pred_fallthru
          _
      $region28: #{tpu_custom_call.1} parent=5 // pred_fallthru
        _
      %p231 = scmp.le.s32.totalorder 1, %s15
      %p232 = scmp.lt.s32.totalorder %s15, 3
      %p233 = pnand %p231, %p232
      %p234 = pneg %p233
      // Predicated region
      $region41: #{tpu_custom_call.1} parent=5 // pred_check
        _
      $region42: #{tpu_custom_call.1} parent=5 // pred_check_branch
        %236 = sbr.rel (%p233) target = $region44
      $region43: #{tpu_custom_call.1} parent=5 // pred_region
        %s237 = ssub.s32 %s15, 1
        %s238 = smul.u32 16, %s20
        %p239 = scmp.lt.s32.totalorder %s238, 31
        %s240 = scalar_select %p239, %s238, 31
        %s241 = smul.addr %s240, 4
        %s242 = scalar_lea.vmem %s0, %s241
        %p243 = pneg %p41
        %p244 = pneg %p38
        %p245 = scmp.lt.s32.totalorder %s20, 1
        %s246 = scalar_select %p245, %s20, 1
        %s247 = scalar_lea.vmem %s1, %s246
        %p248 = pneg %p67
        %p249 = pneg %p64
        %p250 = scmp.lt.s32.totalorder %s20, 1
        %s251 = scalar_select %p250, %s20, 1
        %s252 = scalar_lea.vmem %s2, %s251
        %p253 = pneg %p93
        %p254 = pneg %p90
        %p255 = pneg %p114
        %p256 = pneg %p111
        %p257 = pneg %p135
        %p258 = pneg %p132
        %p259 = pneg %p156
        %p260 = pneg %p153
        %p261 = pneg %p182
        %p262 = pneg %p179
        %s263 = sand.u32 %s169, 1
        %s264 = scalar_lea.sflag [#allocation4], %s263
        %s265 = sand.u32 %s169, 1
        %s266 = smul.addr %s265, 128
        %s267 = scalar_lea.vmem [#allocation3], %s266
        %s268 = smul.u32 16, %s20
        %p269 = scmp.lt.s32.totalorder %s268, 31
        %s270 = scalar_select %p269, %s268, 31
        %s271 = smul.addr %s270, 4
        %s272 = scalar_lea.vmem %s0, %s271
        %s273 = smul.u32 16, %s20
        %p274 = scmp.lt.s32.totalorder %s20, 1
        %s275 = scalar_select %p274, %s20, 1
        %s276 = scalar_lea.vmem %s1, %s275
        %p277 = scmp.lt.s32.totalorder %s20, 1
        %s278 = scalar_select %p277, %s20, 1
        %s279 = scalar_lea.vmem %s2, %s278
        %s280 = smul.u32 16, %s20
        %v282 = vld [vmem:[%s272] sm:$0xf]
        %v283 = vld [vmem:[%s272 + $0x4] sm:$0xf]
        %v284 = vld [vmem:[%s272 + $0x8] sm:$0xf]
        %v285 = vld [vmem:[%s272 + $0xc] sm:$0xf]
        %v286 = vld [vmem:[%s272 + $0x10] sm:$0xf]
        %v287 = vld [vmem:[%s272 + $0x14] sm:$0xf]
        %v288 = vld [vmem:[%s272 + $0x18] sm:$0xf]
        %v289 = vld [vmem:[%s272 + $0x1c] sm:$0xf]
        %v290 = vld [vmem:[%s272 + $0x20] sm:$0xf]
        %v291 = vld [vmem:[%s272 + $0x24] sm:$0xf]
        %v292 = vld [vmem:[%s272 + $0x28] sm:$0xf]
        %v293 = vld [vmem:[%s272 + $0x2c] sm:$0xf]
        %v294 = vld [vmem:[%s272 + $0x30] sm:$0xf]
        %v295 = vld [vmem:[%s272 + $0x34] sm:$0xf]
        %v296 = vld [vmem:[%s272 + $0x38] sm:$0xf]
        %v297 = vld [vmem:[%s272 + $0x3c] sm:$0xf]
        %v298 = vld [vmem:[%s3] sm:$0xf]
        %v299 = vld [vmem:[%s3 + $0x4] sm:$0xf]
        %v300 = vld [vmem:[%s3 + $0x8] sm:$0xf]
        %v301 = vld [vmem:[%s3 + $0xc] sm:$0xf]
        %v302 = vld [vmem:[%s3 + $0x10] sm:$0xf]
        %v303 = vld [vmem:[%s3 + $0x14] sm:$0xf]
        %v304 = vld [vmem:[%s3 + $0x18] sm:$0xf]
        %v305 = vld [vmem:[%s3 + $0x1c] sm:$0xf]
        %v306 = vld [vmem:[%s276] sm:$0x1]
        %v307 = vld [vmem:[%s279] sm:$0x1]
        %v308 = vlaneseq
        %v309 = vshrl.u32 %v308, 7
        %v310 = vadd.s32 %v309, 8
        %v311 = vadd.s32 %v309, 16
        %v312 = vadd.s32 %v309, 24
        %v313 = vadd.s32 %v309, 32
        %v314 = vadd.s32 %v309, 40
        %v315 = vadd.s32 %v309, 48
        %v316 = vadd.s32 %v309, 56
        %v317 = vlaneseq
        %v318 = vshrl.u32 %v317, 7
        %v319 = vsub.s32 0, %v318
        %v320 = vrot.slane %v306, %v319
        %vm321 = vcmp.eq.s32.totalorder %v309, %v320
        %vm322 = vcmp.eq.s32.totalorder %v310, %v320
        %vm323 = vcmp.eq.s32.totalorder %v311, %v320
        %vm324 = vcmp.eq.s32.totalorder %v312, %v320
        %vm325 = vcmp.eq.s32.totalorder %v313, %v320
        %vm326 = vcmp.eq.s32.totalorder %v314, %v320
        %vm327 = vcmp.eq.s32.totalorder %v315, %v320
        %vm328 = vcmp.eq.s32.totalorder %v316, %v320
        %v329 = vsel %vm321, 1, 0
        %v330 = vsel %vm322, 1, 0
        %v331 = vsel %vm323, 1, 0
        %v332 = vsel %vm324, 1, 0
        %v333 = vsel %vm325, 1, 0
        %v334 = vsel %vm326, 1, 0
        %v335 = vsel %vm327, 1, 0
        %v336 = vsel %vm328, 1, 0
        %v337 = vcvt.s32.f32 %v329
        %v338 = vcvt.s32.f32 %v330
        %v339 = vcvt.s32.f32 %v331
        %v340 = vcvt.s32.f32 %v332
        %v341 = vcvt.s32.f32 %v333
        %v342 = vcvt.s32.f32 %v334
        %v343 = vcvt.s32.f32 %v335
        %v344 = vcvt.s32.f32 %v336
        %v345 = vpack.c.bf16 %v338, %v337
        %v346 = vpack.c.bf16 %v340, %v339
        %v347 = vpack.c.bf16 %v342, %v341
        %v348 = vpack.c.bf16 %v344, %v343
        %v349 = vlaneseq
        %v350 = vshrl.u32 %v349, 7
        %v351 = vsub.s32 0, %v350
        %v352 = vrot.slane %v307, %v351
        %vm353 = vcmp.eq.s32.totalorder %v309, %v352
        %vm354 = vcmp.eq.s32.totalorder %v310, %v352
        %vm355 = vcmp.eq.s32.totalorder %v311, %v352
        %vm356 = vcmp.eq.s32.totalorder %v312, %v352
        %vm357 = vcmp.eq.s32.totalorder %v313, %v352
        %vm358 = vcmp.eq.s32.totalorder %v314, %v352
        %vm359 = vcmp.eq.s32.totalorder %v315, %v352
        %vm360 = vcmp.eq.s32.totalorder %v316, %v352
        %v361 = vsel %vm353, 1, 0
        %v362 = vsel %vm354, 1, 0
        %v363 = vsel %vm355, 1, 0
        %v364 = vsel %vm356, 1, 0
        %v365 = vsel %vm357, 1, 0
        %v366 = vsel %vm358, 1, 0
        %v367 = vsel %vm359, 1, 0
        %v368 = vsel %vm360, 1, 0
        %v369 = vcvt.s32.f32 %v361
        %v370 = vcvt.s32.f32 %v362
        %v371 = vcvt.s32.f32 %v363
        %v372 = vcvt.s32.f32 %v364
        %v373 = vcvt.s32.f32 %v365
        %v374 = vcvt.s32.f32 %v366
        %v375 = vcvt.s32.f32 %v367
        %v376 = vcvt.s32.f32 %v368
        %v377 = vpack.c.bf16 %v370, %v369
        %v378 = vpack.c.bf16 %v372, %v371
        %v379 = vpack.c.bf16 %v374, %v373
        %v380 = vpack.c.bf16 %v376, %v375
        %381 = vxpose.xlu0.c.b16.start [1/8] %v345, 128
        %382 = vxpose.xlu0.c.b16.cont [2/8] %v346, 128
        %383 = vxpose.xlu0.c.b16.cont [3/8] %v347, 128
        %384 = vxpose.xlu0.c.b16.cont [4/8] %v348, 128
        %385 = vxpose.xlu0.c.b16.cont [5/8] 0, 128
        %386 = vxpose.xlu0.c.b16.cont [6/8] 0, 128
        %387 = vxpose.xlu0.c.b16.cont [7/8] 0, 128
        %388 = vxpose.xlu0.c.b16.end [8/8] 0, 128
        %v389 = vpop.trf.xlu0
        %v390 = vpop.trf.xlu0
        %v391 = vpop.trf.xlu0
        %v392 = vpop.trf.xlu0
        %v393 = vpop.trf.xlu0
        %v394 = vpop.trf.xlu0
        %v395 = vpop.trf.xlu0
        %v396 = vpop.trf.xlu0
        %v405 = vunpack.c.l.b16 %v298
        %v406 = vunpack.c.l.b16 %v299
        %v407 = vunpack.c.l.b16 %v300
        %v408 = vunpack.c.l.b16 %v301
        %v409 = vunpack.c.l.b16 %v302
        %v410 = vunpack.c.l.b16 %v303
        %v411 = vunpack.c.l.b16 %v304
        %v412 = vunpack.c.l.b16 %v305
        %v413 = vpack.c.b16 %v406, %v405
        %v414 = vpack.c.b16 %v408, %v407
        %v415 = vpack.c.b16 %v410, %v409
        %v416 = vpack.c.b16 %v412, %v411
        %vm421 = vcmask 523264
        %v423 = vsel %vm421, %v389, 0
        %v426 = vsel %vm421, %v390, 0
        %v429 = vsel %vm421, %v391, 0
        %v432 = vsel %vm421, %v392, 0
        %v435 = vsel %vm421, %v393, 0
        %v438 = vsel %vm421, %v394, 0
        %v441 = vsel %vm421, %v395, 0
        %v444 = vsel %vm421, %v396, 0
        %446 = vmatprep.subr.bf16.mxu0 0
        %447 = vmatpush1.bf16.msra.mxu0 %v413
        %448 = vmatprep.subr.bf16.mxu0 0
        %449 = vmatpush1.bf16.msra.mxu0 %v414
        %450 = vmatprep.subr.bf16.mxu0 0
        %451 = vmatpush1.bf16.msra.mxu0 %v415
        %452 = vmatprep.subr.bf16.mxu0 0
        %453 = vmatpush1.bf16.msra.mxu0 %v416
        %454 = vmatprep.subr.bf16.mxu0 0
        %455 = vmatpush1.bf16.msra.mxu0 0
        %456 = vmatprep.subr.bf16.mxu0 0
        %457 = vmatpush1.bf16.msra.mxu0 0
        %458 = vmatprep.subr.bf16.mxu0 0
        %459 = vmatpush1.bf16.msra.mxu0 0
        %460 = vmatprep.subr.bf16.mxu0 0
        %461 = vmatpush1.bf16.msra.mxu0 0
        %462 = vmatprep.subr.bf16.mxu0 0
        %463 = vmatpush1.bf16.msra.mxu0 0
        %464 = vmatprep.subr.bf16.mxu0 0
        %465 = vmatpush1.bf16.msra.mxu0 0
        %466 = vmatprep.subr.bf16.mxu0 0
        %467 = vmatpush1.bf16.msra.mxu0 0
        %468 = vmatprep.subr.bf16.mxu0 0
        %469 = vmatpush1.bf16.msra.mxu0 0
        %470 = vmatprep.subr.bf16.mxu0 0
        %471 = vmatpush1.bf16.msra.mxu0 0
        %472 = vmatprep.subr.bf16.mxu0 0
        %473 = vmatpush1.bf16.msra.mxu0 0
        %474 = vmatprep.subr.bf16.mxu0 0
        %475 = vmatpush1.bf16.msra.mxu0 0
        %476 = vmatprep.subr.bf16.mxu0 0
        %477 = vmatpush1.bf16.msra.mxu0 0
        %478 = vmatprep.mubr.bf16.mxu0 0
        %479 = vmatmul.mubr.bf16.gmra.mrb[0].mxu0 %v423
        %v480 = vpop.f32.mrb[0].mxu0
        %v481 = vadd.f32 0.0, %v480
        %v482 = vpop.f32.mrb[0].mxu0
        %v483 = vpop.f32.mrb[0].mxu0
        %v484 = vadd.f32 0.0, %v483
        %v485 = vpop.f32.mrb[0].mxu0
        %486 = vmatprep.mubr.bf16.mxu0 0
        %487 = vmatmul.mubr.bf16.gmra.mrb[0].mxu0 %v426
        %v488 = vpop.f32.mrb[0].mxu0
        %v489 = vadd.f32 0.0, %v488
        %v490 = vpop.f32.mrb[0].mxu0
        %v491 = vpop.f32.mrb[0].mxu0
        %v492 = vadd.f32 0.0, %v491
        %v493 = vpop.f32.mrb[0].mxu0
        %494 = vmatprep.mubr.bf16.mxu0 0
        %495 = vmatmul.mubr.bf16.gmra.mrb[0].mxu0 %v429
        %v496 = vpop.f32.mrb[0].mxu0
        %v497 = vadd.f32 0.0, %v496
        %v498 = vpop.f32.mrb[0].mxu0
        %v499 = vpop.f32.mrb[0].mxu0
        %v500 = vadd.f32 0.0, %v499
        %v501 = vpop.f32.mrb[0].mxu0
        %502 = vmatprep.mubr.bf16.mxu0 0
        %503 = vmatmul.mubr.bf16.gmra.mrb[0].mxu0 %v432
        %v504 = vpop.f32.mrb[0].mxu0
        %v505 = vadd.f32 0.0, %v504
        %v506 = vpop.f32.mrb[0].mxu0
        %v507 = vpop.f32.mrb[0].mxu0
        %v508 = vadd.f32 0.0, %v507
        %v509 = vpop.f32.mrb[0].mxu0
        %510 = vmatprep.mubr.bf16.mxu0 0
        %511 = vmatmul.mubr.bf16.gmra.mrb[0].mxu0 %v435
        %v512 = vpop.f32.mrb[0].mxu0
        %v513 = vadd.f32 0.0, %v512
        %v514 = vpop.f32.mrb[0].mxu0
        %v515 = vpop.f32.mrb[0].mxu0
        %v516 = vadd.f32 0.0, %v515
        %v517 = vpop.f32.mrb[0].mxu0
        %518 = vmatprep.mubr.bf16.mxu0 0
        %519 = vmatmul.mubr.bf16.gmra.mrb[0].mxu0 %v438
        %v520 = vpop.f32.mrb[0].mxu0
        %v521 = vadd.f32 0.0, %v520
        %v522 = vpop.f32.mrb[0].mxu0
        %v523 = vpop.f32.mrb[0].mxu0
        %v524 = vadd.f32 0.0, %v523
        %v525 = vpop.f32.mrb[0].mxu0
        %526 = vmatprep.mubr.bf16.mxu0 0
        %527 = vmatmul.mubr.bf16.gmra.mrb[0].mxu0 %v441
        %v528 = vpop.f32.mrb[0].mxu0
        %v529 = vadd.f32 0.0, %v528
        %v530 = vpop.f32.mrb[0].mxu0
        %v531 = vpop.f32.mrb[0].mxu0
        %v532 = vadd.f32 0.0, %v531
        %v533 = vpop.f32.mrb[0].mxu0
        %534 = vmatprep.mubr.bf16.mxu0 0
        %535 = vmatmul.mubr.bf16.gmra.mrb[0].mxu0 %v444
        %v536 = vpop.f32.mrb[0].mxu0
        %v537 = vadd.f32 0.0, %v536
        %v538 = vpop.f32.mrb[0].mxu0
        %v539 = vpop.f32.mrb[0].mxu0
        %v540 = vadd.f32 0.0, %v539
        %v541 = vpop.f32.mrb[0].mxu0
        %542 = vdwg.mxu0
        %543 = vxpose.xlu0.c.b16.start [1/8] %v377, 128
        %544 = vxpose.xlu0.c.b16.cont [2/8] %v378, 128
        %545 = vxpose.xlu0.c.b16.cont [3/8] %v379, 128
        %546 = vxpose.xlu0.c.b16.cont [4/8] %v380, 128
        %547 = vxpose.xlu0.c.b16.cont [5/8] 0, 128
        %548 = vxpose.xlu0.c.b16.cont [6/8] 0, 128
        %549 = vxpose.xlu0.c.b16.cont [7/8] 0, 128
        %550 = vxpose.xlu0.c.b16.end [8/8] 0, 128
        %v551 = vpop.trf.xlu0
        %v552 = vpop.trf.xlu0
        %v553 = vpop.trf.xlu0
        %v554 = vpop.trf.xlu0
        %v555 = vpop.trf.xlu0
        %v556 = vpop.trf.xlu0
        %v557 = vpop.trf.xlu0
        %v558 = vpop.trf.xlu0
        %v560 = vsel %vm421, %v551, 0
        %v563 = vsel %vm421, %v552, 0
        %v566 = vsel %vm421, %v553, 0
        %v569 = vsel %vm421, %v554, 0
        %v572 = vsel %vm421, %v555, 0
        %v575 = vsel %vm421, %v556, 0
        %v578 = vsel %vm421, %v557, 0
        %v581 = vsel %vm421, %v558, 0
        %583 = vmatprep.subr.bf16.mxu0 0
        %584 = vmatpush1.bf16.msra.mxu0 %v413
        %585 = vmatprep.subr.bf16.mxu0 0
        %586 = vmatpush1.bf16.msra.mxu0 %v414
        %587 = vmatprep.subr.bf16.mxu0 0
        %588 = vmatpush1.bf16.msra.mxu0 %v415
        %589 = vmatprep.subr.bf16.mxu0 0
        %590 = vmatpush1.bf16.msra.mxu0 %v416
        %591 = vmatprep.subr.bf16.mxu0 0
        %592 = vmatpush1.bf16.msra.mxu0 0
        %593 = vmatprep.subr.bf16.mxu0 0
        %594 = vmatpush1.bf16.msra.mxu0 0
        %595 = vmatprep.subr.bf16.mxu0 0
        %596 = vmatpush1.bf16.msra.mxu0 0
        %597 = vmatprep.subr.bf16.mxu0 0
        %598 = vmatpush1.bf16.msra.mxu0 0
        %599 = vmatprep.subr.bf16.mxu0 0
        %600 = vmatpush1.bf16.msra.mxu0 0
        %601 = vmatprep.subr.bf16.mxu0 0
        %602 = vmatpush1.bf16.msra.mxu0 0
        %603 = vmatprep.subr.bf16.mxu0 0
        %604 = vmatpush1.bf16.msra.mxu0 0
        %605 = vmatprep.subr.bf16.mxu0 0
        %606 = vmatpush1.bf16.msra.mxu0 0
        %607 = vmatprep.subr.bf16.mxu0 0
        %608 = vmatpush1.bf16.msra.mxu0 0
        %609 = vmatprep.subr.bf16.mxu0 0
        %610 = vmatpush1.bf16.msra.mxu0 0
        %611 = vmatprep.subr.bf16.mxu0 0
        %612 = vmatpush1.bf16.msra.mxu0 0
        %613 = vmatprep.subr.bf16.mxu0 0
        %614 = vmatpush1.bf16.msra.mxu0 0
        %615 = vmatprep.mubr.bf16.mxu0 0
        %616 = vmatmul.mubr.bf16.gmra.mrb[0].mxu0 %v560
        %v617 = vpop.f32.mrb[0].mxu0
        %v618 = vadd.f32 0.0, %v617
        %v619 = vpop.f32.mrb[0].mxu0
        %v620 = vpop.f32.mrb[0].mxu0
        %v621 = vadd.f32 0.0, %v620
        %v622 = vpop.f32.mrb[0].mxu0
        %623 = vmatprep.mubr.bf16.mxu0 0
        %624 = vmatmul.mubr.bf16.gmra.mrb[0].mxu0 %v563
        %v625 = vpop.f32.mrb[0].mxu0
        %v626 = vadd.f32 0.0, %v625
        %v627 = vpop.f32.mrb[0].mxu0
        %v628 = vpop.f32.mrb[0].mxu0
        %v629 = vadd.f32 0.0, %v628
        %v630 = vpop.f32.mrb[0].mxu0
        %631 = vmatprep.mubr.bf16.mxu0 0
        %632 = vmatmul.mubr.bf16.gmra.mrb[0].mxu0 %v566
        %v633 = vpop.f32.mrb[0].mxu0
        %v634 = vadd.f32 0.0, %v633
        %v635 = vpop.f32.mrb[0].mxu0
        %v636 = vpop.f32.mrb[0].mxu0
        %v637 = vadd.f32 0.0, %v636
        %v638 = vpop.f32.mrb[0].mxu0
        %639 = vmatprep.mubr.bf16.mxu0 0
        %640 = vmatmul.mubr.bf16.gmra.mrb[0].mxu0 %v569
        %v641 = vpop.f32.mrb[0].mxu0
        %v642 = vadd.f32 0.0, %v641
        %v643 = vpop.f32.mrb[0].mxu0
        %v644 = vpop.f32.mrb[0].mxu0
        %v645 = vadd.f32 0.0, %v644
        %v646 = vpop.f32.mrb[0].mxu0
        %647 = vmatprep.mubr.bf16.mxu0 0
        %648 = vmatmul.mubr.bf16.gmra.mrb[0].mxu0 %v572
        %v649 = vpop.f32.mrb[0].mxu0
        %v650 = vadd.f32 0.0, %v649
        %v651 = vpop.f32.mrb[0].mxu0
        %v652 = vpop.f32.mrb[0].mxu0
        %v653 = vadd.f32 0.0, %v652
        %v654 = vpop.f32.mrb[0].mxu0
        %655 = vmatprep.mubr.bf16.mxu0 0
        %656 = vmatmul.mubr.bf16.gmra.mrb[0].mxu0 %v575
        %v657 = vpop.f32.mrb[0].mxu0
        %v658 = vadd.f32 0.0, %v657
        %v659 = vpop.f32.mrb[0].mxu0
        %v660 = vpop.f32.mrb[0].mxu0
        %v661 = vadd.f32 0.0, %v660
        %v662 = vpop.f32.mrb[0].mxu0
        %663 = vmatprep.mubr.bf16.mxu0 0
        %664 = vmatmul.mubr.bf16.gmra.mrb[0].mxu0 %v578
        %v665 = vpop.f32.mrb[0].mxu0
        %v666 = vadd.f32 0.0, %v665
        %v667 = vpop.f32.mrb[0].mxu0
        %v668 = vpop.f32.mrb[0].mxu0
        %v669 = vadd.f32 0.0, %v668
        %v670 = vpop.f32.mrb[0].mxu0
        %671 = vmatprep.mubr.bf16.mxu0 0
        %672 = vmatmul.mubr.bf16.gmra.mrb[0].mxu0 %v581
        %v673 = vpop.f32.mrb[0].mxu0
        %v674 = vadd.f32 0.0, %v673
        %v675 = vpop.f32.mrb[0].mxu0
        %v676 = vpop.f32.mrb[0].mxu0
        %v677 = vadd.f32 0.0, %v676
        %v678 = vpop.f32.mrb[0].mxu0
        %679 = vdwg.mxu0
        %v696 = vunpack.c.l.b16 %v282
        %v697 = vunpack.c.l.b16 %v283
        %v698 = vunpack.c.l.b16 %v284
        %v699 = vunpack.c.l.b16 %v285
        %v700 = vunpack.c.l.b16 %v286
        %v701 = vunpack.c.l.b16 %v287
        %v702 = vunpack.c.l.b16 %v288
        %v703 = vunpack.c.l.b16 %v289
        %v704 = vunpack.c.l.b16 %v290
        %v705 = vunpack.c.l.b16 %v291
        %v706 = vunpack.c.l.b16 %v292
        %v707 = vunpack.c.l.b16 %v293
        %v708 = vunpack.c.l.b16 %v294
        %v709 = vunpack.c.l.b16 %v295
        %v710 = vunpack.c.l.b16 %v296
        %v711 = vunpack.c.l.b16 %v297
        %v712 = vpack.c.b16 %v697, %v696
        %v713 = vpack.c.b16 %v699, %v698
        %v714 = vpack.c.b16 %v701, %v700
        %v715 = vpack.c.b16 %v703, %v702
        %v716 = vpack.c.b16 %v705, %v704
        %v717 = vpack.c.b16 %v707, %v706
        %v718 = vpack.c.b16 %v709, %v708
        %v719 = vpack.c.b16 %v711, %v710
        %vm728 = vcmask 64512
        %729 = vst.msk [vmem:[#allocation2] sm:$0xff] %vm728, %v712
        %730 = vst.msk [vmem:[#allocation2 + $0x8] sm:$0xff] %vm728, %v713
        %731 = vst.msk [vmem:[#allocation2 + $0x10] sm:$0xff] %vm728, %v714
        %732 = vst.msk [vmem:[#allocation2 + $0x18] sm:$0xff] %vm728, %v715
        %733 = vst.msk [vmem:[#allocation2 + $0x20] sm:$0xff] %vm728, %v716
        %734 = vst.msk [vmem:[#allocation2 + $0x28] sm:$0xff] %vm728, %v717
        %735 = vst.msk [vmem:[#allocation2 + $0x30] sm:$0xff] %vm728, %v718
        %736 = vst.msk [vmem:[#allocation2 + $0x38] sm:$0xff] %vm728, %v719
        %v737 = vpack.c.bf16 %v484, %v481
        %v738 = vpack.c.bf16 %v492, %v489
        %v739 = vpack.c.bf16 %v500, %v497
        %v740 = vpack.c.bf16 %v508, %v505
        %v741 = vpack.c.bf16 %v516, %v513
        %v742 = vpack.c.bf16 %v524, %v521
        %v743 = vpack.c.bf16 %v532, %v529
        %v744 = vpack.c.bf16 %v540, %v537
        %753 = vrot.lane.b32.xlu0 %v737, 8
        %v754 = vpop.permute.xlu0 %753
        %755 = vrot.lane.b32.xlu0 %v738, 8
        %v756 = vpop.permute.xlu0 %755
        %757 = vrot.lane.b32.xlu0 %v739, 8
        %v758 = vpop.permute.xlu0 %757
        %759 = vrot.lane.b32.xlu0 %v740, 8
        %v760 = vpop.permute.xlu0 %759
        %761 = vrot.lane.b32.xlu0 %v741, 8
        %v762 = vpop.permute.xlu0 %761
        %763 = vrot.lane.b32.xlu0 %v742, 8
        %v764 = vpop.permute.xlu0 %763
        %765 = vrot.lane.b32.xlu0 %v743, 8
        %v766 = vpop.permute.xlu0 %765
        %767 = vrot.lane.b32.xlu0 %v744, 8
        %v768 = vpop.permute.xlu0 %767
        %vm777 = vcmask 130112
        %778 = vst.msk [vmem:[#allocation2] sm:$0xff] %vm777, %v754
        %779 = vst.msk [vmem:[#allocation2 + $0x8] sm:$0xff] %vm777, %v756
        %780 = vst.msk [vmem:[#allocation2 + $0x10] sm:$0xff] %vm777, %v758
        %781 = vst.msk [vmem:[#allocation2 + $0x18] sm:$0xff] %vm777, %v760
        %782 = vst.msk [vmem:[#allocation2 + $0x20] sm:$0xff] %vm777, %v762
        %783 = vst.msk [vmem:[#allocation2 + $0x28] sm:$0xff] %vm777, %v764
        %784 = vst.msk [vmem:[#allocation2 + $0x30] sm:$0xff] %vm777, %v766
        %785 = vst.msk [vmem:[#allocation2 + $0x38] sm:$0xff] %vm777, %v768
        %v786 = vpack.c.bf16 %v621, %v618
        %v787 = vpack.c.bf16 %v629, %v626
        %v788 = vpack.c.bf16 %v637, %v634
        %v789 = vpack.c.bf16 %v645, %v642
        %v790 = vpack.c.bf16 %v653, %v650
        %v791 = vpack.c.bf16 %v661, %v658
        %v792 = vpack.c.bf16 %v669, %v666
        %v793 = vpack.c.bf16 %v677, %v674
        %802 = vrot.lane.b32.xlu0 %v786, 16
        %v803 = vpop.permute.xlu0 %802
        %804 = vrot.lane.b32.xlu0 %v787, 16
        %v805 = vpop.permute.xlu0 %804
        %806 = vrot.lane.b32.xlu0 %v788, 16
        %v807 = vpop.permute.xlu0 %806
        %808 = vrot.lane.b32.xlu0 %v789, 16
        %v809 = vpop.permute.xlu0 %808
        %810 = vrot.lane.b32.xlu0 %v790, 16
        %v811 = vpop.permute.xlu0 %810
        %812 = vrot.lane.b32.xlu0 %v791, 16
        %v813 = vpop.permute.xlu0 %812
        %814 = vrot.lane.b32.xlu0 %v792, 16
        %v815 = vpop.permute.xlu0 %814
        %816 = vrot.lane.b32.xlu0 %v793, 16
        %v817 = vpop.permute.xlu0 %816
        %vm826 = vcmask 195712
        %827 = vst.msk [vmem:[#allocation2] sm:$0xff] %vm826, %v803
        %828 = vst.msk [vmem:[#allocation2 + $0x8] sm:$0xff] %vm826, %v805
        %829 = vst.msk [vmem:[#allocation2 + $0x10] sm:$0xff] %vm826, %v807
        %830 = vst.msk [vmem:[#allocation2 + $0x18] sm:$0xff] %vm826, %v809
        %831 = vst.msk [vmem:[#allocation2 + $0x20] sm:$0xff] %vm826, %v811
        %832 = vst.msk [vmem:[#allocation2 + $0x28] sm:$0xff] %vm826, %v813
        %833 = vst.msk [vmem:[#allocation2 + $0x30] sm:$0xff] %vm826, %v815
        %834 = vst.msk [vmem:[#allocation2 + $0x38] sm:$0xff] %vm826, %v817
        %v835 = vld [vmem:[#allocation2] sm:$0xff]
        %v836 = vld [vmem:[#allocation2 + $0x8] sm:$0xff]
        %v837 = vld [vmem:[#allocation2 + $0x10] sm:$0xff]
        %v838 = vld [vmem:[#allocation2 + $0x18] sm:$0xff]
        %v839 = vld [vmem:[#allocation2 + $0x20] sm:$0xff]
        %v840 = vld [vmem:[#allocation2 + $0x28] sm:$0xff]
        %v841 = vld [vmem:[#allocation2 + $0x30] sm:$0xff]
        %v842 = vld [vmem:[#allocation2 + $0x38] sm:$0xff]
        %v843 = vld [vmem:[%s4] sm:$0xf]
        %v844 = vld [vmem:[%s4 + $0x4] sm:$0xf]
        %v845 = vld [vmem:[%s4 + $0x8] sm:$0xf]
        %v846 = vld [vmem:[%s5] sm:$0x1]
        %v848 = vlaneseq
        %v849 = vshrl.u32 %v848, 7
        %v850 = vsub.s32 0, %v849
        %v851 = vrot.slane %v846, %v850
        %v856 = vunpack.c.l.b16 %v843
        %v857 = vunpack.c.l.b16 %v844
        %v858 = vunpack.c.l.b16 %v845
        %v859 = vpack.c.b16 %v857, %v856
        %v860 = vpack.c.b16 %v858, %v858
        %vm862 = vcmask 195584
        %v864 = vsel %vm862, %v835, 0
        %v867 = vsel %vm862, %v836, 0
        %v870 = vsel %vm862, %v837, 0
        %v873 = vsel %vm862, %v838, 0
        %v876 = vsel %vm862, %v839, 0
        %v879 = vsel %vm862, %v840, 0
        %v882 = vsel %vm862, %v841, 0
        %v885 = vsel %vm862, %v842, 0
        %vm887 = vcmask 1043456
        %v889 = vsel %vm887, %v860, 0
        %891 = vmatprep.subr.bf16.mxu0 0
        %892 = vmatpush1.bf16.msra.mxu0 %v859
        %893 = vmatprep.subr.bf16.mxu0 0
        %894 = vmatpush1.bf16.msra.mxu0 %v889
        %895 = vmatprep.subr.bf16.mxu0 0
        %896 = vmatpush1.bf16.msra.mxu0 0
        %897 = vmatprep.subr.bf16.mxu0 0
        %898 = vmatpush1.bf16.msra.mxu0 0
        %899 = vmatprep.subr.bf16.mxu0 0
        %900 = vmatpush1.bf16.msra.mxu0 0
        %901 = vmatprep.subr.bf16.mxu0 0
        %902 = vmatpush1.bf16.msra.mxu0 0
        %903 = vmatprep.subr.bf16.mxu0 0
        %904 = vmatpush1.bf16.msra.mxu0 0
        %905 = vmatprep.subr.bf16.mxu0 0
        %906 = vmatpush1.bf16.msra.mxu0 0
        %907 = vmatprep.subr.bf16.mxu0 0
        %908 = vmatpush1.bf16.msra.mxu0 0
        %909 = vmatprep.subr.bf16.mxu0 0
        %910 = vmatpush1.bf16.msra.mxu0 0
        %911 = vmatprep.subr.bf16.mxu0 0
        %912 = vmatpush1.bf16.msra.mxu0 0
        %913 = vmatprep.subr.bf16.mxu0 0
        %914 = vmatpush1.bf16.msra.mxu0 0
        %915 = vmatprep.subr.bf16.mxu0 0
        %916 = vmatpush1.bf16.msra.mxu0 0
        %917 = vmatprep.subr.bf16.mxu0 0
        %918 = vmatpush1.bf16.msra.mxu0 0
        %919 = vmatprep.subr.bf16.mxu0 0
        %920 = vmatpush1.bf16.msra.mxu0 0
        %921 = vmatprep.subr.bf16.mxu0 0
        %922 = vmatpush1.bf16.msra.mxu0 0
        %923 = vmatprep.mubr.bf16.mxu0 0
        %924 = vmatmul.mubr.bf16.gmra.mrb[0].mxu0 %v864
        %v925 = vpop.f32.mrb[0].mxu0
        %v926 = vadd.f32 %v851, %v925
        %v927 = vpop.f32.mrb[0].mxu0
        %v928 = vpop.f32.mrb[0].mxu0
        %v929 = vadd.f32 %v851, %v928
        %v930 = vpop.f32.mrb[0].mxu0
        %931 = vmatprep.mubr.bf16.mxu0 0
        %932 = vmatmul.mubr.bf16.gmra.mrb[0].mxu0 %v867
        %v933 = vpop.f32.mrb[0].mxu0
        %v934 = vadd.f32 %v851, %v933
        %v935 = vpop.f32.mrb[0].mxu0
        %v936 = vpop.f32.mrb[0].mxu0
        %v937 = vadd.f32 %v851, %v936
        %v938 = vpop.f32.mrb[0].mxu0
        %939 = vmatprep.mubr.bf16.mxu0 0
        %940 = vmatmul.mubr.bf16.gmra.mrb[0].mxu0 %v870
        %v941 = vpop.f32.mrb[0].mxu0
        %v942 = vadd.f32 %v851, %v941
        %v943 = vpop.f32.mrb[0].mxu0
        %v944 = vpop.f32.mrb[0].mxu0
        %v945 = vadd.f32 %v851, %v944
        %v946 = vpop.f32.mrb[0].mxu0
        %947 = vmatprep.mubr.bf16.mxu0 0
        %948 = vmatmul.mubr.bf16.gmra.mrb[0].mxu0 %v873
        %v949 = vpop.f32.mrb[0].mxu0
        %v950 = vadd.f32 %v851, %v949
        %v951 = vpop.f32.mrb[0].mxu0
        %v952 = vpop.f32.mrb[0].mxu0
        %v953 = vadd.f32 %v851, %v952
        %v954 = vpop.f32.mrb[0].mxu0
        %955 = vmatprep.mubr.bf16.mxu0 0
        %956 = vmatmul.mubr.bf16.gmra.mrb[0].mxu0 %v876
        %v957 = vpop.f32.mrb[0].mxu0
        %v958 = vadd.f32 %v851, %v957
        %v959 = vpop.f32.mrb[0].mxu0
        %v960 = vpop.f32.mrb[0].mxu0
        %v961 = vadd.f32 %v851, %v960
        %v962 = vpop.f32.mrb[0].mxu0
        %963 = vmatprep.mubr.bf16.mxu0 0
        %964 = vmatmul.mubr.bf16.gmra.mrb[0].mxu0 %v879
        %v965 = vpop.f32.mrb[0].mxu0
        %v966 = vadd.f32 %v851, %v965
        %v967 = vpop.f32.mrb[0].mxu0
        %v968 = vpop.f32.mrb[0].mxu0
        %v969 = vadd.f32 %v851, %v968
        %v970 = vpop.f32.mrb[0].mxu0
        %971 = vmatprep.mubr.bf16.mxu0 0
        %972 = vmatmul.mubr.bf16.gmra.mrb[0].mxu0 %v882
        %v973 = vpop.f32.mrb[0].mxu0
        %v974 = vadd.f32 %v851, %v973
        %v975 = vpop.f32.mrb[0].mxu0
        %v976 = vpop.f32.mrb[0].mxu0
        %v977 = vadd.f32 %v851, %v976
        %v978 = vpop.f32.mrb[0].mxu0
        %979 = vmatprep.mubr.bf16.mxu0 0
        %980 = vmatmul.mubr.bf16.gmra.mrb[0].mxu0 %v885
        %v981 = vpop.f32.mrb[0].mxu0
        %v982 = vadd.f32 %v851, %v981
        %v983 = vpop.f32.mrb[0].mxu0
        %v984 = vpop.f32.mrb[0].mxu0
        %v985 = vadd.f32 %v851, %v984
        %v986 = vpop.f32.mrb[0].mxu0
        %987 = vdwg.mxu0
        %988 = vst [vmem:[%s267] sm:$0xff] %v926
        %989 = vst [vmem:[%s267 + $0x8] sm:$0xff] %v929
        %990 = vst [vmem:[%s267 + $0x10] sm:$0xff] %v934
        %991 = vst [vmem:[%s267 + $0x18] sm:$0xff] %v937
        %992 = vst [vmem:[%s267 + $0x20] sm:$0xff] %v942
        %993 = vst [vmem:[%s267 + $0x28] sm:$0xff] %v945
        %994 = vst [vmem:[%s267 + $0x30] sm:$0xff] %v950
        %995 = vst [vmem:[%s267 + $0x38] sm:$0xff] %v953
        %996 = vst [vmem:[%s267 + $0x40] sm:$0xff] %v958
        %997 = vst [vmem:[%s267 + $0x48] sm:$0xff] %v961
        %998 = vst [vmem:[%s267 + $0x50] sm:$0xff] %v966
        %999 = vst [vmem:[%s267 + $0x58] sm:$0xff] %v969
        %1000 = vst [vmem:[%s267 + $0x60] sm:$0xff] %v974
        %1001 = vst [vmem:[%s267 + $0x68] sm:$0xff] %v977
        %1002 = vst [vmem:[%s267 + $0x70] sm:$0xff] %v982
        %1003 = vst [vmem:[%s267 + $0x78] sm:$0xff] %v985
        %s1004 = sand.u32 %s169, 1
        %s1005 = scalar_lea.sflag [#allocation4], %s1004
        %s1006 = sand.u32 %s169, 1
        %s1007 = smul.addr %s1006, 128
        %s1008 = scalar_lea.vmem [#allocation3], %s1007
        // Predicated region
        $region45: #{tpu_custom_call.1} parent=43 // pred_check
          %p1009 = pneg %p179
        $region46: #{tpu_custom_call.1} parent=43 // pred_check_branch
          %1011 = sbr.rel (%p1009) target = $region48
        $region47: #{tpu_custom_call.1} parent=43 // pred_region
          %s1012 = smul.u32 16, %s20
          %s1014 = ssub.s32 2048, 2048
          %1015 = vsyncadd %s1005, %s1014
          %s1016 = smul.addr %s1012, 128
          %s1017 = scalar_lea.hbm %s6, %s1016
          %s1018 = sshll.u32 %s1008, 4
          %s1019 = int_to_ptr.vmem [resolvable:$true] %s1018
          %1024 = dma.vmem_to_hbm [thread:$0]  %s1019, 2048, %s1017, %s1005, 128, 128, 8
        $region48: #{tpu_custom_call.1} parent=43 // pred_fallthru
          _
      $region44: #{tpu_custom_call.1} parent=5 // pred_fallthru
        _
      %p1025 = scmp.le.s32.totalorder 2, %s15
      // Predicated region
      $region49: #{tpu_custom_call.1} parent=5 // pred_check
        %p1026 = pneg %p1025
      $region50: #{tpu_custom_call.1} parent=5 // pred_check_branch
        %1028 = sbr.rel (%p1026) target = $region52
      $region51: #{tpu_custom_call.1} parent=5 // pred_region
        %s1029 = ssub.s32 %s15, 2
        // Predicated region
        $region53: #{tpu_custom_call.1} parent=51 // pred_check
          %p1030 = pneg %p185
        $region54: #{tpu_custom_call.1} parent=51 // pred_check_branch
          %1032 = sbr.rel (%p1030) target = $region56
        $region55: #{tpu_custom_call.1} parent=51 // pred_region
          %s1033 = sand.u32 %s170, 1
          %s1034 = scalar_lea.sflag [#allocation4], %s1033
          %s1035 = sand.u32 %s170, 1
          %s1036 = smul.addr %s1035, 128
          %s1037 = scalar_lea.vmem [#allocation3], %s1036
          %1038 = dma.done %s1034, 2048
        $region56: #{tpu_custom_call.1} parent=51 // pred_fallthru
          _
      $region52: #{tpu_custom_call.1} parent=5 // pred_fallthru
        _
    $region6: #{tpu_custom_call.1} parent=1 // loop_footer
      %s19 = sadd.s32 1, %s15
    $region7: #{tpu_custom_call.1} parent=1 // loop_footer_branch
      %14 = sbr.rel target = $region3
    $region8: #{tpu_custom_call.1} parent=1 // loop_exit
      _
    %1039 = vsyncpa [#allocation4], 1
    %s1040 = scalar_lea.sflag [#allocation4], 1
    %1041 = vsyncpa %s1040, 1

</llo_original>
